<compile_context>
chip_gen: v5e
topology: v5e:2x2
jax: 0.10.0
libtpu: 0.0.40
codegen_flags: <defaults>
</compile_context>

<pallas_src>
import jax
import jax.numpy as jnp
from jax.experimental import pallas as pl
from jax.experimental.pallas import tpu as pltpu

LANE = 128
SUBLANE = 8
NEG_BIG = -1e30  # additive mask bias (finite; avoids -inf -> NaN propagation)


def _round_up(x, m):
    return ((x + m - 1) // m) * m


def _soft_dot_attention_kernel(h_ref, ctx_ref, mask_ref, w_in_ref, w_out_ref,
                               h_tilde_ref, attn_ref):
    h = h_ref[...]                      # (Bt, D)    native dtype (f32 or bf16)
    ctx = ctx_ref[...]                  # (Bt, S, D) native dtype
    mask = mask_ref[...]                # (Bt, S)    int32, nonzero = masked out
    w_in = w_in_ref[...]                # (D, D)     pre-transposed: (in, out)
    w_out = w_out_ref[...]              # (2D, D)    pre-transposed: (in, out)

    d = h.shape[-1]

    # target = linear_in(h) = h @ w_in_t   (MXU, native dtype, f32 accumulation)
    target = jnp.dot(h, w_in, preferred_element_type=jnp.float32)        # (Bt, D) f32

    # scores[b, s] = <ctx[b, s, :], target[b, :]>
    # Broadcast-mul (VPU) + lane reduce (XLU) with f32 accumulation; avoids a
    # degenerate N=1 MXU bmm and avoids an explicit f32 copy of ctx.
    prod = ctx * target.astype(ctx.dtype)[:, None, :]                    # (Bt, S, D)
    scores = jnp.sum(prod, axis=-1, dtype=jnp.float32)                   # (Bt, S) f32

    # Additive mask bias built in-kernel (0 where kept, -1e30 where masked).
    scores = scores + jnp.where(mask != 0,
                                jnp.float32(NEG_BIG), jnp.float32(0.0))

    # Softmax over the sequence axis (f32 VPU/EUP math; exact divide -- free,
    # the kernel is HBM-bound -- so the returned attn is accurate).
    m = jnp.max(scores, axis=-1, keepdims=True)
    p = jnp.exp(scores - m)
    denom = jnp.sum(p, axis=-1, keepdims=True)
    attn = p / denom                                                     # (Bt, S) f32

    # weighted_context[b, d] = sum_s attn[b, s] * ctx[b, s, d]
    # Broadcast-mul + sublane reduce (avoids a degenerate M=1 MXU bmm).
    wctx = jnp.sum(ctx * attn.astype(ctx.dtype)[:, :, None],
                   axis=1, dtype=jnp.float32)                            # (Bt, D) f32

    # h_tilde = tanh(linear_out(cat([wctx, h], dim=1)))
    # Split matmul against the pre-transposed (2D, D) weight: rows [0, D) multiply
    # wctx, rows [D, 2D) multiply h -- no concatenation buffer needed.
    wctx_c = wctx.astype(w_out.dtype)
    out = (jnp.dot(wctx_c, w_out[:d, :], preferred_element_type=jnp.float32)
           + jnp.dot(h, w_out[d:, :], preferred_element_type=jnp.float32))

    h_tilde_ref[...] = jnp.tanh(out).astype(h_tilde_ref.dtype)
    attn_ref[...] = attn


def soft_dot_attention(h, context, w_in, w_out, mask=None, *,
                       b_tile=None, vmem_limit_bytes=48 * 1024 * 1024):
    """Pallas-backed SoftDotAttention forward.

    h:       (B, D)
    context: (B, S, D)        (f32 or bf16)
    w_in:    (D, D)           PyTorch linear_in.weight  (out_features, in_features)
    w_out:   (D, 2D)          PyTorch linear_out.weight (out_features, in_features)
    mask:    (B, S) bool/int or None -- nonzero entries are masked out
    returns (h_tilde (B, D), attn (B, S) f32)
    """
    B, S, D = context.shape
    assert h.shape == (B, D)
    assert w_in.shape == (D, D)
    assert w_out.shape == (D, 2 * D)

    # Tiny int32 mask stream (zeros when mask is None); bias is built in-kernel.
    if mask is None:
        mask_i = jnp.zeros((B, S), dtype=jnp.int32)
    else:
        mask_i = mask.astype(jnp.int32)

    # One-time transpose of the grid-invariant weights to (in, out) layout so the
    # kernel contracts on the RHS major axis (no per-step relayout in VMEM).
    w_in_t = jnp.transpose(w_in)       # (D, D)
    w_out_t = jnp.transpose(w_out)     # (2D, D)

    # Batch tile heuristic: account for double-buffered context input, the f32
    # broadcast-product temporaries, and double-buffered f32 scores/attn/h_tilde.
    ctx_itemsize = jnp.dtype(context.dtype).itemsize
    w_itemsize = jnp.dtype(w_in_t.dtype).itemsize
    bytes_per_row = S * D * (2 * ctx_itemsize + 2 * 4) + (S + D) * 16
    weight_bytes = 2 * 3 * D * D * w_itemsize          # double-buffered w_in + w_out
    if b_tile is None:
        budget = max(4 * 1024 * 1024, 32 * 1024 * 1024 - weight_bytes)
        rows = budget // max(bytes_per_row, 1)
        rows = max(SUBLANE, (rows // SUBLANE) * SUBLANE)
        b_tile = int(min(256, rows, _round_up(B, SUBLANE)))
        # v7x has 2 TensorCores: guarantee >= 2 grid steps whenever B is big
        # enough to split, so "parallel" can shard the batch across both cores.
        if B > SUBLANE:
            half = _round_up((B + 1) // 2, SUBLANE)
            b_tile = int(min(b_tile, max(SUBLANE, half)))

    grid = (pl.cdiv(B, b_tile),)

    h_tilde, attn = pl.pallas_call(
        _soft_dot_attention_kernel,
        out_shape=(
            jax.ShapeDtypeStruct((B, D), h.dtype),
            jax.ShapeDtypeStruct((B, S), jnp.float32),
        ),
        grid=grid,
        in_specs=[
            pl.BlockSpec((b_tile, D), lambda i: (i, 0)),       # h       : per batch tile
            pl.BlockSpec((b_tile, S, D), lambda i: (i, 0, 0)), # context : per batch tile
            pl.BlockSpec((b_tile, S), lambda i: (i, 0)),       # mask    : per batch tile
            pl.BlockSpec((D, D), lambda i: (0, 0)),            # w_in_t  : VMEM-resident
            pl.BlockSpec((2 * D, D), lambda i: (0, 0)),        # w_out_t : VMEM-resident
        ],
        out_specs=(
            pl.BlockSpec((b_tile, D), lambda i: (i, 0)),
            pl.BlockSpec((b_tile, S), lambda i: (i, 0)),
        ),
        compiler_params=pltpu.CompilerParams(
            dimension_semantics=("parallel",),   # batch is embarrassingly parallel
            vmem_limit_bytes=vmem_limit_bytes,   # <= v7x 64 MiB physical VMEM
        ),
    )(h, context, mask_i, w_in_t, w_out_t)

    return h_tilde, attn


def _reference(h, context, w_in, w_out, mask=None):
    """Pure-JAX reference mirroring the PyTorch forward."""
    target = h @ w_in.T                                    # (B, D)
    scores = jnp.einsum('bsd,bd->bs', context, target)     # (B, S)
    if mask is not None:
        scores = jnp.where(mask, -jnp.inf, scores)
    attn = jax.nn.softmax(scores, axis=1)
    wc = jnp.einsum('bs,bsd->bd', attn, context)
    h_tilde = jnp.tanh(jnp.concatenate([wc, h], axis=1) @ w_out.T)
    return h_tilde, attn


if __name__ == "__main__":
    B, S, D = 2, 8, 32
    key = jax.random.PRNGKey(0)
    k_h, k_ctx, k_win, k_wout, k_mask = jax.random.split(key, 5)

    h = jax.random.normal(k_h, (B, D), dtype=jnp.float32)
    context = jax.random.normal(k_ctx, (B, S, D), dtype=jnp.float32)
    # "nn.Linear(bias=False)" weights, PyTorch layout (out_features, in_features)
    w_in = jax.random.normal(k_win, (D, D), dtype=jnp.float32) * (1.0 / jnp.sqrt(D))
    w_out = jax.random.normal(k_wout, (D, 2 * D), dtype=jnp.float32) * (1.0 / jnp.sqrt(2 * D))
    # Mask a few positions per batch (True = masked out), keep >=1 unmasked per row.
    mask = jax.random.bernoulli(k_mask, p=0.25, shape=(B, S))
    mask = mask.at[:, 0].set(False)

    TOL = 1e-4  # exact softmax divide; only reduction-order / EUP exp differences

    # Masked run
    h_tilde, attn = soft_dot_attention(h, context, w_in, w_out, mask=mask)
    jax.block_until_ready((h_tilde, attn))
    ref_h_tilde, ref_attn = _reference(h, context, w_in, w_out, mask=mask)
    assert h_tilde.shape == (B, D) and attn.shape == (B, S)
    assert jnp.allclose(h_tilde, ref_h_tilde, atol=TOL, rtol=TOL)
    assert jnp.allclose(attn, ref_attn, atol=TOL, rtol=TOL)

    # Unmasked run
    h_tilde2, attn2 = soft_dot_attention(h, context, w_in, w_out, mask=None)
    jax.block_until_ready((h_tilde2, attn2))
    ref_h_tilde2, ref_attn2 = _reference(h, context, w_in, w_out, mask=None)
    assert jnp.allclose(h_tilde2, ref_h_tilde2, atol=TOL, rtol=TOL)
    assert jnp.allclose(attn2, ref_attn2, atol=TOL, rtol=TOL)

    print("KERNEL_OK")
</pallas_src>

<mosaic_0001>
module attributes {stable_mosaic.version = 11 : i64} {
  func.func @_soft_dot_attention_kernel(%arg0: i32, %arg1: memref<8x32xf32, #tpu.memory_space<vmem>>, %arg2: memref<8x8x32xf32, #tpu.memory_space<vmem>>, %arg3: memref<8x8xi32, #tpu.memory_space<vmem>>, %arg4: memref<32x32xf32, #tpu.memory_space<vmem>>, %arg5: memref<64x32xf32, #tpu.memory_space<vmem>>, %arg6: memref<8x32xf32, #tpu.memory_space<vmem>>, %arg7: memref<8x8xf32, #tpu.memory_space<vmem>>) attributes {dimension_semantics = [#tpu.dimension_semantics<parallel>], iteration_bounds = array<i64: 1>, scalar_prefetch = 0 : i64, scratch_operands = 0 : i64, tpu.core_type = #tpu.core_type<tc>, window_params = [{transform_indices = @transform_0, window_bounds = array<i64: 8, 32>}, {transform_indices = @transform_1, window_bounds = array<i64: 8, 8, 32>}, {transform_indices = @transform_2, window_bounds = array<i64: 8, 8>}, {pipeline_mode = #tpu.pipeline_mode<synchronous>, transform_indices = @transform_3, window_bounds = array<i64: 32, 32>}, {pipeline_mode = #tpu.pipeline_mode<synchronous>, transform_indices = @transform_4, window_bounds = array<i64: 64, 32>}, {transform_indices = @transform_5, window_bounds = array<i64: 8, 32>}, {transform_indices = @transform_6, window_bounds = array<i64: 8, 8>}]} {
    %c0 = arith.constant 0 : index
    %c0_0 = arith.constant 0 : index
    %0 = vector.load %arg1[%c0, %c0_0] : memref<8x32xf32, #tpu.memory_space<vmem>>, vector<8x32xf32>
    %c0_1 = arith.constant 0 : index
    %c0_2 = arith.constant 0 : index
    %c0_3 = arith.constant 0 : index
    %1 = vector.load %arg2[%c0_1, %c0_2, %c0_3] : memref<8x8x32xf32, #tpu.memory_space<vmem>>, vector<8x8x32xf32>
    %c0_4 = arith.constant 0 : index
    %c0_5 = arith.constant 0 : index
    %2 = vector.load %arg3[%c0_4, %c0_5] : memref<8x8xi32, #tpu.memory_space<vmem>>, vector<8x8xi32>
    %c0_6 = arith.constant 0 : index
    %c0_7 = arith.constant 0 : index
    %3 = vector.load %arg4[%c0_6, %c0_7] : memref<32x32xf32, #tpu.memory_space<vmem>>, vector<32x32xf32>
    %c0_8 = arith.constant 0 : index
    %c0_9 = arith.constant 0 : index
    %4 = vector.load %arg5[%c0_8, %c0_9] : memref<64x32xf32, #tpu.memory_space<vmem>>, vector<64x32xf32>
    %cst = arith.constant dense<0.000000e+00> : vector<8x32xf32>
    %5 = tpu.matmul %0, %3, %cst {dimension_numbers = #tpu.dot_dimension_numbers<[1], [0], [0], [1], [0, 0, 1, 1], [], []>} : vector<8x32xf32>, vector<32x32xf32>, vector<8x32xf32> -> vector<8x32xf32>
    %6 = vector.shape_cast %5 : vector<8x32xf32> to vector<8x1x32xf32>
    %7 = vector.broadcast %6 : vector<8x1x32xf32> to vector<8x8x32xf32>
    %8 = arith.mulf %1, %7 : vector<8x8x32xf32>
    %cst_10 = arith.constant dense<0.000000e+00> : vector<8x8xf32>
    %9 = vector.multi_reduction <add>, %8, %cst_10 [2] : vector<8x8x32xf32> to vector<8x8xf32>
    %c0_i32 = arith.constant 0 : i32
    %10 = vector.broadcast %c0_i32 : i32 to vector<8x8xi32>
    %11 = arith.cmpi ne, %2, %10 : vector<8x8xi32>
    %cst_11 = arith.constant -1.000000e+30 : f32
    %cst_12 = arith.constant 0.000000e+00 : f32
    %12 = vector.broadcast %cst_11 : f32 to vector<8x8xf32>
    %13 = vector.broadcast %cst_12 : f32 to vector<8x8xf32>
    %14 = arith.select %11, %12, %13 : vector<8x8xi1>, vector<8x8xf32>
    %15 = arith.addf %9, %14 : vector<8x8xf32>
    %cst_13 = arith.constant dense<0xFF800000> : vector<8xf32>
    %16 = vector.multi_reduction <maximumf>, %15, %cst_13 [1] : vector<8x8xf32> to vector<8xf32>
    %17 = vector.shape_cast %16 : vector<8xf32> to vector<8x1xf32>
    %18 = vector.broadcast %17 : vector<8x1xf32> to vector<8x8xf32>
    %19 = arith.subf %15, %18 : vector<8x8xf32>
    %20 = math.exp %19 : vector<8x8xf32>
    %cst_14 = arith.constant dense<0.000000e+00> : vector<8xf32>
    %21 = vector.multi_reduction <add>, %20, %cst_14 [1] : vector<8x8xf32> to vector<8xf32>
    %22 = vector.shape_cast %21 : vector<8xf32> to vector<8x1xf32>
    %23 = vector.broadcast %22 : vector<8x1xf32> to vector<8x8xf32>
    %24 = arith.divf %20, %23 : vector<8x8xf32>
    %25 = vector.shape_cast %24 : vector<8x8xf32> to vector<8x8x1xf32>
    %26 = vector.broadcast %25 : vector<8x8x1xf32> to vector<8x8x32xf32>
    %27 = arith.mulf %1, %26 : vector<8x8x32xf32>
    %cst_15 = arith.constant dense<0.000000e+00> : vector<8x32xf32>
    %28 = vector.multi_reduction <add>, %27, %cst_15 [1] : vector<8x8x32xf32> to vector<8x32xf32>
    %29 = vector.extract_strided_slice %4 {offsets = [0, 0], sizes = [32, 32], strides = [1, 1]} : vector<64x32xf32> to vector<32x32xf32>
    %cst_16 = arith.constant dense<0.000000e+00> : vector<8x32xf32>
    %30 = tpu.matmul %28, %29, %cst_16 {dimension_numbers = #tpu.dot_dimension_numbers<[1], [0], [0], [1], [0, 0, 1, 1], [], []>} : vector<8x32xf32>, vector<32x32xf32>, vector<8x32xf32> -> vector<8x32xf32>
    %31 = vector.extract_strided_slice %4 {offsets = [32, 0], sizes = [32, 32], strides = [1, 1]} : vector<64x32xf32> to vector<32x32xf32>
    %cst_17 = arith.constant dense<0.000000e+00> : vector<8x32xf32>
    %32 = tpu.matmul %0, %31, %cst_17 {dimension_numbers = #tpu.dot_dimension_numbers<[1], [0], [0], [1], [0, 0, 1, 1], [], []>} : vector<8x32xf32>, vector<32x32xf32>, vector<8x32xf32> -> vector<8x32xf32>
    %33 = arith.addf %30, %32 : vector<8x32xf32>
    %34 = math.tanh %33 : vector<8x32xf32>
    %c0_18 = arith.constant 0 : index
    %c0_19 = arith.constant 0 : index
    %35 = vector.load %arg6[%c0_18, %c0_19] : memref<8x32xf32, #tpu.memory_space<vmem>>, vector<8x32xf32>
    tpu.vector_store %arg6[%c0_18, %c0_19], %34 {strides = array<i32>} : memref<8x32xf32, #tpu.memory_space<vmem>>, vector<8x32xf32>,
    %c0_20 = arith.constant 0 : index
    %c0_21 = arith.constant 0 : index
    %36 = vector.load %arg7[%c0_20, %c0_21] : memref<8x8xf32, #tpu.memory_space<vmem>>, vector<8x8xf32>
    tpu.vector_store %arg7[%c0_20, %c0_21], %24 {strides = array<i32>} : memref<8x8xf32, #tpu.memory_space<vmem>>, vector<8x8xf32>,
    return
  }
  func.func @transform_0(%arg0: i32) -> (i32, i32) {
    %c0_i32 = arith.constant 0 : i32
    %c0_i32_0 = arith.constant 0 : i32
    return %arg0, %c0_i32 : i32, i32
  }
  func.func @transform_1(%arg0: i32) -> (i32, i32, i32) {
    %c0_i32 = arith.constant 0 : i32
    %c0_i32_0 = arith.constant 0 : i32
    %c0_i32_1 = arith.constant 0 : i32
    return %arg0, %c0_i32, %c0_i32_0 : i32, i32, i32
  }
  func.func @transform_2(%arg0: i32) -> (i32, i32) {
    %c0_i32 = arith.constant 0 : i32
    %c0_i32_0 = arith.constant 0 : i32
    return %arg0, %c0_i32 : i32, i32
  }
  func.func @transform_3(%arg0: i32) -> (i32, i32) {
    %c0_i32 = arith.constant 0 : i32
    %c0_i32_0 = arith.constant 0 : i32
    %c0_i32_1 = arith.constant 0 : i32
    return %c0_i32, %c0_i32_0 : i32, i32
  }
  func.func @transform_4(%arg0: i32) -> (i32, i32) {
    %c0_i32 = arith.constant 0 : i32
    %c0_i32_0 = arith.constant 0 : i32
    %c0_i32_1 = arith.constant 0 : i32
    return %c0_i32, %c0_i32_0 : i32, i32
  }
  func.func @transform_5(%arg0: i32) -> (i32, i32) {
    %c0_i32 = arith.constant 0 : i32
    %c0_i32_0 = arith.constant 0 : i32
    return %arg0, %c0_i32 : i32, i32
  }
  func.func @transform_6(%arg0: i32) -> (i32, i32) {
    %c0_i32 = arith.constant 0 : i32
    %c0_i32_0 = arith.constant 0 : i32
    return %arg0, %c0_i32 : i32, i32
  }
}

</mosaic_0001>

<llo_original>
// kernel: tpu_custom_call.1
$region0: #{tpu_custom_call.1}
  #allocation0 [shape = 'u32[]', space=smem, size = 0x4, offset = 0x4, fixed_abs, tag = 'smem constant byte address 0x4 - core index']
  #allocation1 [shape = 'u32[72,128]{1,0:T(1,128)}', space=vmem, size = 0x9000, scoped, tag = 'internal scratch']
  %s0 = inlined_call_operand.vmem [shape: f32[2,32], index: 0, kind: input, shape index: {}]
  %s1 = inlined_call_operand.vmem [shape: f32[2,8,32], index: 1, kind: input, shape index: {}]
  %s2 = inlined_call_operand.vmem [shape: s32[2,8], index: 2, kind: input, shape index: {}]
  %s3 = inlined_call_operand.vmem [shape: f32[32,32], index: 3, kind: input, shape index: {}]
  %s4 = inlined_call_operand.vmem [shape: f32[64,32], index: 4, kind: input, shape index: {}]
  %s5 = inlined_call_operand.hbm [shape: f32[2,32], index: 5, kind: output, shape index: {0}]
  %s6 = inlined_call_operand.hbm [shape: f32[2,8], index: 6, kind: output, shape index: {1}]
  %7 = xla_tuple %s5, %s6
  %s8 = sld [smem:[#allocation0]]
  $region38: #{tpu_custom_call.1} parent=0
    _
  %s10 = ssub.s32 1, %s8
  %s11 = scalar_select 0, %s10, %s8
  $region1: #{tpu_custom_call.1} parent=0
    #allocation2 [shape = 'u8[4096]{0}', space=vmem, size = 0x1000, scoped, tag = 'output window, operand 0, single buffered']
    #allocation3 [shape = 's32[1]{0}', space=sflag, size = 0x4, scoped, tag = 'scoped memory for tpu_custom_call.1']
    #allocation4 [shape = 'u8[4096]{0}', space=vmem, size = 0x1000, scoped, tag = 'output window, operand 1, single buffered']
    #allocation5 [shape = 's32[1]{0}', space=sflag, size = 0x4, scoped, tag = 'scoped memory for tpu_custom_call.1']
    %12 = vsyncpa [#allocation3], 0
    %13 = vsyncpa [#allocation5], 0
    // Predicated region
    $region2: #{tpu_custom_call.1} parent=1 // pred_check
      _
    $region3: #{tpu_custom_call.1} parent=1 // pred_check_branch
      %15 = sbr.rel (0) target = $region5
    $region4: #{tpu_custom_call.1} parent=1 // pred_region
      _
    $region5: #{tpu_custom_call.1} parent=1 // pred_fallthru
      _
    // Predicated region
    $region6: #{tpu_custom_call.1} parent=1 // pred_check
      _
    $region7: #{tpu_custom_call.1} parent=1 // pred_check_branch
      %17 = sbr.rel (0) target = $region9
    $region8: #{tpu_custom_call.1} parent=1 // pred_region
      _
    $region9: #{tpu_custom_call.1} parent=1 // pred_fallthru
      _
    // Predicated region
    $region10: #{tpu_custom_call.1} parent=1 // pred_check
      _
    $region11: #{tpu_custom_call.1} parent=1 // pred_check_branch
      %19 = sbr.rel (0) target = $region13
    $region12: #{tpu_custom_call.1} parent=1 // pred_region
      _
    $region13: #{tpu_custom_call.1} parent=1 // pred_fallthru
      _
    // Predicated region
    $region14: #{tpu_custom_call.1} parent=1 // pred_check
      _
    $region15: #{tpu_custom_call.1} parent=1 // pred_check_branch
      %21 = sbr.rel (0) target = $region17
    $region16: #{tpu_custom_call.1} parent=1 // pred_region
      _
    $region17: #{tpu_custom_call.1} parent=1 // pred_fallthru
      _
    // Predicated region
    $region18: #{tpu_custom_call.1} parent=1 // pred_check
      _
    $region19: #{tpu_custom_call.1} parent=1 // pred_check_branch
      %23 = sbr.rel (0) target = $region21
    $region20: #{tpu_custom_call.1} parent=1 // pred_region
      _
    $region21: #{tpu_custom_call.1} parent=1 // pred_fallthru
      _
    %v24 = vld [vmem:[%s0] sm:$0xff]
    %v25 = vld [vmem:[%s1] sm:$0xff]
    %v26 = vld [vmem:[%s1 + $0x8] sm:$0xff]
    %v27 = vld [vmem:[%s1 + $0x10] sm:$0xff]
    %v28 = vld [vmem:[%s1 + $0x18] sm:$0xff]
    %v29 = vld [vmem:[%s1 + $0x20] sm:$0xff]
    %v30 = vld [vmem:[%s1 + $0x28] sm:$0xff]
    %v31 = vld [vmem:[%s1 + $0x30] sm:$0xff]
    %v32 = vld [vmem:[%s1 + $0x38] sm:$0xff]
    %v33 = vld [vmem:[%s2] sm:$0xff]
    %v34 = vld [vmem:[%s3] sm:$0xff]
    %v35 = vld [vmem:[%s3 + $0x8] sm:$0xff]
    %v36 = vld [vmem:[%s3 + $0x10] sm:$0xff]
    %v37 = vld [vmem:[%s3 + $0x18] sm:$0xff]
    %v38 = vld [vmem:[%s4] sm:$0xff]
    %v39 = vld [vmem:[%s4 + $0x8] sm:$0xff]
    %v40 = vld [vmem:[%s4 + $0x10] sm:$0xff]
    %v41 = vld [vmem:[%s4 + $0x18] sm:$0xff]
    %v42 = vld [vmem:[%s4 + $0x20] sm:$0xff]
    %v43 = vld [vmem:[%s4 + $0x28] sm:$0xff]
    %v44 = vld [vmem:[%s4 + $0x30] sm:$0xff]
    %v45 = vld [vmem:[%s4 + $0x38] sm:$0xff]
    %vm46 = vcmask 261120
    %v48 = vsel %vm46, %v24, 0
    %50 = vmatpush.msra.mxu0 0.0
    %51 = vmatpush.msra.mxu0 0.0
    %52 = vmatpush.msra.mxu0 0.0
    %53 = vmatpush.msra.mxu0 0.0
    %54 = vmatpush.msra.mxu0 0.0
    %55 = vmatpush.msra.mxu0 0.0
    %56 = vmatpush.msra.mxu0 0.0
    %57 = vmatpush.msra.mxu0 0.0
    %58 = vmatpush.msra.mxu0 0.0
    %59 = vmatpush.msra.mxu0 0.0
    %60 = vmatpush.msra.mxu0 0.0
    %61 = vmatpush.msra.mxu0 0.0
    %62 = vmatpush.msra.mxu0 %v37
    %63 = vmatpush.msra.mxu0 %v36
    %64 = vmatpush.msra.mxu0 %v35
    %65 = vmatpush.msra.mxu0 %v34
    %66 = vmatmul.f32.gmra.mxu0 %v48
    %v67 = vpop.f32.mrf.mxu0
    %v68 = vadd.f32 0.0, %v67
    %69 = vdwg.mxu0
    %v71 = vrot.slane %v68, 1
    %v72 = vrot.slane %v68, 2
    %v73 = vrot.slane %v68, 3
    %v74 = vrot.slane %v68, 4
    %v75 = vrot.slane %v68, 5
    %v76 = vrot.slane %v68, 6
    %v77 = vrot.slane %v68, 7
    %v78 = vperm.slane %v68, 0
    %v79 = vperm.slane %v71, 0
    %v80 = vperm.slane %v72, 0
    %v81 = vperm.slane %v73, 0
    %v82 = vperm.slane %v74, 0
    %v83 = vperm.slane %v75, 0
    %v84 = vperm.slane %v76, 0
    %v85 = vperm.slane %v77, 0
    %v94 = vmul.f32 %v25, %v78
    %v95 = vmul.f32 %v26, %v79
    %v96 = vmul.f32 %v27, %v80
    %v97 = vmul.f32 %v28, %v81
    %v98 = vmul.f32 %v29, %v82
    %v99 = vmul.f32 %v30, %v83
    %v100 = vmul.f32 %v31, %v84
    %v101 = vmul.f32 %v32, %v85
    %v102 = vsel %vm46, %v94, 0.0
    %103 = vadd.xlane.f32.xlu0 %v102
    %v104 = vpop.xlane.xlu0 %103
    %v105 = vsel %vm46, %v95, 0.0
    %106 = vadd.xlane.f32.xlu0 %v105
    %v107 = vpop.xlane.xlu0 %106
    %v108 = vsel %vm46, %v96, 0.0
    %109 = vadd.xlane.f32.xlu0 %v108
    %v110 = vpop.xlane.xlu0 %109
    %v111 = vsel %vm46, %v97, 0.0
    %112 = vadd.xlane.f32.xlu0 %v111
    %v113 = vpop.xlane.xlu0 %112
    %v114 = vsel %vm46, %v98, 0.0
    %115 = vadd.xlane.f32.xlu0 %v114
    %v116 = vpop.xlane.xlu0 %115
    %v117 = vsel %vm46, %v99, 0.0
    %118 = vadd.xlane.f32.xlu0 %v117
    %v119 = vpop.xlane.xlu0 %118
    %v120 = vsel %vm46, %v100, 0.0
    %121 = vadd.xlane.f32.xlu0 %v120
    %v122 = vpop.xlane.xlu0 %121
    %v123 = vsel %vm46, %v101, 0.0
    %124 = vadd.xlane.f32.xlu0 %v123
    %v125 = vpop.xlane.xlu0 %124
    %vm126 = vcmp.ne.s32.totalorder %v33, 0
    %v127 = vsel %vm126, -1e+30, 0.0
    %v129 = vperm.slane %v127, 0
    %v130 = vlaneseq
    %v131 = vshrl.u32 %v130, 7
    %133 = vset.pattern.permute.xlu0 %v131
    %134 = vperm.xlu0 %133, %v129
    %v135 = vpop.permute.xlu0 %134
    %v136 = vperm.slane %v127, 1
    %v137 = vlaneseq
    %v138 = vshrl.u32 %v137, 7
    %140 = vset.pattern.permute.xlu0 %v138
    %141 = vperm.xlu0 %140, %v136
    %v142 = vpop.permute.xlu0 %141
    %v143 = vperm.slane %v127, 2
    %v144 = vlaneseq
    %v145 = vshrl.u32 %v144, 7
    %147 = vset.pattern.permute.xlu0 %v145
    %148 = vperm.xlu0 %147, %v143
    %v149 = vpop.permute.xlu0 %148
    %v150 = vperm.slane %v127, 3
    %v151 = vlaneseq
    %v152 = vshrl.u32 %v151, 7
    %154 = vset.pattern.permute.xlu0 %v152
    %155 = vperm.xlu0 %154, %v150
    %v156 = vpop.permute.xlu0 %155
    %v157 = vperm.slane %v127, 4
    %v158 = vlaneseq
    %v159 = vshrl.u32 %v158, 7
    %161 = vset.pattern.permute.xlu0 %v159
    %162 = vperm.xlu0 %161, %v157
    %v163 = vpop.permute.xlu0 %162
    %v164 = vperm.slane %v127, 5
    %v165 = vlaneseq
    %v166 = vshrl.u32 %v165, 7
    %168 = vset.pattern.permute.xlu0 %v166
    %169 = vperm.xlu0 %168, %v164
    %v170 = vpop.permute.xlu0 %169
    %v171 = vperm.slane %v127, 6
    %v172 = vlaneseq
    %v173 = vshrl.u32 %v172, 7
    %175 = vset.pattern.permute.xlu0 %v173
    %176 = vperm.xlu0 %175, %v171
    %v177 = vpop.permute.xlu0 %176
    %v178 = vperm.slane %v127, 7
    %v179 = vlaneseq
    %v180 = vshrl.u32 %v179, 7
    %182 = vset.pattern.permute.xlu0 %v180
    %183 = vperm.xlu0 %182, %v178
    %v184 = vpop.permute.xlu0 %183
    %v193 = vadd.f32 %v104, %v135
    %v194 = vadd.f32 %v107, %v142
    %v195 = vadd.f32 %v110, %v149
    %v196 = vadd.f32 %v113, %v156
    %v197 = vadd.f32 %v116, %v163
    %v198 = vadd.f32 %v119, %v170
    %v199 = vadd.f32 %v122, %v177
    %v200 = vadd.f32 %v125, %v184
    %209 = vset.pattern.permute.xlu0 0
    %210 = vperm.xlu0 %209, %v193
    %v211 = vpop.permute.xlu0 %210
    %212 = vset.pattern.permute.xlu0 0
    %213 = vperm.xlu0 %212, %v194
    %v214 = vpop.permute.xlu0 %213
    %215 = vset.pattern.permute.xlu0 0
    %216 = vperm.xlu0 %215, %v195
    %v217 = vpop.permute.xlu0 %216
    %218 = vset.pattern.permute.xlu0 0
    %219 = vperm.xlu0 %218, %v196
    %v220 = vpop.permute.xlu0 %219
    %221 = vset.pattern.permute.xlu0 0
    %222 = vperm.xlu0 %221, %v197
    %v223 = vpop.permute.xlu0 %222
    %224 = vset.pattern.permute.xlu0 0
    %225 = vperm.xlu0 %224, %v198
    %v226 = vpop.permute.xlu0 %225
    %227 = vset.pattern.permute.xlu0 0
    %228 = vperm.xlu0 %227, %v199
    %v229 = vpop.permute.xlu0 %228
    %230 = vset.pattern.permute.xlu0 0
    %231 = vperm.xlu0 %230, %v200
    %v232 = vpop.permute.xlu0 %231
    %v233 = vlaneseq
    %v234 = vand.u32 %v233, 127
    %v235 = vperm.slane %v211, %v234
    %v236 = vperm.slane %v214, %v234
    %v237 = vperm.slane %v217, %v234
    %v238 = vperm.slane %v220, %v234
    %v239 = vperm.slane %v223, %v234
    %v240 = vperm.slane %v226, %v234
    %v241 = vperm.slane %v229, %v234
    %v242 = vperm.slane %v232, %v234
    %vm243 = vcmask 1041409
    %v244 = vsel %vm243, %v236, %v235
    %vm245 = vcmask 1042434
    %v246 = vsel %vm245, %v237, %v244
    %vm247 = vcmask 1043459
    %v248 = vsel %vm247, %v238, %v246
    %vm249 = vcmask 1044484
    %v250 = vsel %vm249, %v239, %v248
    %vm251 = vcmask 1045509
    %v252 = vsel %vm251, %v240, %v250
    %vm253 = vcmask 1046534
    %v254 = vsel %vm253, %v241, %v252
    %vm255 = vcmask 1047559
    %v256 = vsel %vm255, %v242, %v254
    %vm258 = vcmask 64512
    %v259 = vsel %vm258, %v256, -inf
    %260 = vmax.xlane.f32.xlu0 %v259
    %v261 = vpop.xlane.xlu0 %260
    %v263 = vperm.slane %v261, 0
    %v264 = vperm.slane %v261, 1
    %v265 = vperm.slane %v261, 2
    %v266 = vperm.slane %v261, 3
    %v267 = vperm.slane %v261, 4
    %v268 = vperm.slane %v261, 5
    %v269 = vperm.slane %v261, 6
    %v270 = vperm.slane %v261, 7
    %v279 = vsub.f32 %v193, %v263
    %v280 = vsub.f32 %v194, %v264
    %v281 = vsub.f32 %v195, %v265
    %v282 = vsub.f32 %v196, %v266
    %v283 = vsub.f32 %v197, %v267
    %v284 = vsub.f32 %v198, %v268
    %v285 = vsub.f32 %v199, %v269
    %v286 = vsub.f32 %v200, %v270
    %v287 = vmul.f32 %v279, 1.442695
    %v288 = vpow.pop %v287
    %v289 = vmul.f32 %v280, 1.442695
    %v290 = vpow.pop %v289
    %v291 = vmul.f32 %v281, 1.442695
    %v292 = vpow.pop %v291
    %v293 = vmul.f32 %v282, 1.442695
    %v294 = vpow.pop %v293
    %v295 = vmul.f32 %v283, 1.442695
    %v296 = vpow.pop %v295
    %v297 = vmul.f32 %v284, 1.442695
    %v298 = vpow.pop %v297
    %v299 = vmul.f32 %v285, 1.442695
    %v300 = vpow.pop %v299
    %v301 = vmul.f32 %v286, 1.442695
    %v302 = vpow.pop %v301
    %311 = vset.pattern.permute.xlu0 0
    %312 = vperm.xlu0 %311, %v288
    %v313 = vpop.permute.xlu0 %312
    %314 = vset.pattern.permute.xlu0 0
    %315 = vperm.xlu0 %314, %v290
    %v316 = vpop.permute.xlu0 %315
    %317 = vset.pattern.permute.xlu0 0
    %318 = vperm.xlu0 %317, %v292
    %v319 = vpop.permute.xlu0 %318
    %320 = vset.pattern.permute.xlu0 0
    %321 = vperm.xlu0 %320, %v294
    %v322 = vpop.permute.xlu0 %321
    %323 = vset.pattern.permute.xlu0 0
    %324 = vperm.xlu0 %323, %v296
    %v325 = vpop.permute.xlu0 %324
    %326 = vset.pattern.permute.xlu0 0
    %327 = vperm.xlu0 %326, %v298
    %v328 = vpop.permute.xlu0 %327
    %329 = vset.pattern.permute.xlu0 0
    %330 = vperm.xlu0 %329, %v300
    %v331 = vpop.permute.xlu0 %330
    %332 = vset.pattern.permute.xlu0 0
    %333 = vperm.xlu0 %332, %v302
    %v334 = vpop.permute.xlu0 %333
    %v335 = vperm.slane %v313, %v234
    %v336 = vperm.slane %v316, %v234
    %v337 = vperm.slane %v319, %v234
    %v338 = vperm.slane %v322, %v234
    %v339 = vperm.slane %v325, %v234
    %v340 = vperm.slane %v328, %v234
    %v341 = vperm.slane %v331, %v234
    %v342 = vperm.slane %v334, %v234
    %v343 = vsel %vm243, %v336, %v335
    %v344 = vsel %vm245, %v337, %v343
    %v345 = vsel %vm247, %v338, %v344
    %v346 = vsel %vm249, %v339, %v345
    %v347 = vsel %vm251, %v340, %v346
    %v348 = vsel %vm253, %v341, %v347
    %v349 = vsel %vm255, %v342, %v348
    %v351 = vsel %vm258, %v349, 0.0
    %352 = vadd.xlane.f32.xlu0 %v351
    %v353 = vpop.xlane.xlu0 %352
    %v355 = vperm.slane %v353, 0
    %v356 = vperm.slane %v353, 1
    %v357 = vperm.slane %v353, 2
    %v358 = vperm.slane %v353, 3
    %v359 = vperm.slane %v353, 4
    %v360 = vperm.slane %v353, 5
    %v361 = vperm.slane %v353, 6
    %v362 = vperm.slane %v353, 7
    %v371 = vrcp.pop %v355
    %v372 = vmul.f32 %v355, %v371
    %v373 = vsub.f32 1.0, %v372
    %v374 = vmul.f32 %v371, %v373
    %v375 = vadd.f32 %v371, %v374
    %vm376 = vweird.f32 %v355
    %vm377 = vweird.f32 %v371
    %vm378 = vmor %vm376, %vm377
    %v379 = vsel %vm378, %v371, %v375
    %v380 = vand.u32 2147483647, %v355
    %vm381 = vcmp.eq.f32.partialorder %v380, 8.507059e+37
    %v382 = vand.u32 %v355, 2147483648
    %v383 = vor.u32 1.1754944e-38, %v382
    %v384 = vsel %vm381, %v383, %v379
    %v385 = vmul.f32 %v288, %v384
    %v386 = vrcp.pop %v356
    %v387 = vmul.f32 %v356, %v386
    %v388 = vsub.f32 1.0, %v387
    %v389 = vmul.f32 %v386, %v388
    %v390 = vadd.f32 %v386, %v389
    %vm391 = vweird.f32 %v356
    %vm392 = vweird.f32 %v386
    %vm393 = vmor %vm391, %vm392
    %v394 = vsel %vm393, %v386, %v390
    %v395 = vand.u32 2147483647, %v356
    %vm396 = vcmp.eq.f32.partialorder %v395, 8.507059e+37
    %v397 = vand.u32 %v356, 2147483648
    %v398 = vor.u32 1.1754944e-38, %v397
    %v399 = vsel %vm396, %v398, %v394
    %v400 = vmul.f32 %v290, %v399
    %v401 = vrcp.pop %v357
    %v402 = vmul.f32 %v357, %v401
    %v403 = vsub.f32 1.0, %v402
    %v404 = vmul.f32 %v401, %v403
    %v405 = vadd.f32 %v401, %v404
    %vm406 = vweird.f32 %v357
    %vm407 = vweird.f32 %v401
    %vm408 = vmor %vm406, %vm407
    %v409 = vsel %vm408, %v401, %v405
    %v410 = vand.u32 2147483647, %v357
    %vm411 = vcmp.eq.f32.partialorder %v410, 8.507059e+37
    %v412 = vand.u32 %v357, 2147483648
    %v413 = vor.u32 1.1754944e-38, %v412
    %v414 = vsel %vm411, %v413, %v409
    %v415 = vmul.f32 %v292, %v414
    %v416 = vrcp.pop %v358
    %v417 = vmul.f32 %v358, %v416
    %v418 = vsub.f32 1.0, %v417
    %v419 = vmul.f32 %v416, %v418
    %v420 = vadd.f32 %v416, %v419
    %vm421 = vweird.f32 %v358
    %vm422 = vweird.f32 %v416
    %vm423 = vmor %vm421, %vm422
    %v424 = vsel %vm423, %v416, %v420
    %v425 = vand.u32 2147483647, %v358
    %vm426 = vcmp.eq.f32.partialorder %v425, 8.507059e+37
    %v427 = vand.u32 %v358, 2147483648
    %v428 = vor.u32 1.1754944e-38, %v427
    %v429 = vsel %vm426, %v428, %v424
    %v430 = vmul.f32 %v294, %v429
    %v431 = vrcp.pop %v359
    %v432 = vmul.f32 %v359, %v431
    %v433 = vsub.f32 1.0, %v432
    %v434 = vmul.f32 %v431, %v433
    %v435 = vadd.f32 %v431, %v434
    %vm436 = vweird.f32 %v359
    %vm437 = vweird.f32 %v431
    %vm438 = vmor %vm436, %vm437
    %v439 = vsel %vm438, %v431, %v435
    %v440 = vand.u32 2147483647, %v359
    %vm441 = vcmp.eq.f32.partialorder %v440, 8.507059e+37
    %v442 = vand.u32 %v359, 2147483648
    %v443 = vor.u32 1.1754944e-38, %v442
    %v444 = vsel %vm441, %v443, %v439
    %v445 = vmul.f32 %v296, %v444
    %v446 = vrcp.pop %v360
    %v447 = vmul.f32 %v360, %v446
    %v448 = vsub.f32 1.0, %v447
    %v449 = vmul.f32 %v446, %v448
    %v450 = vadd.f32 %v446, %v449
    %vm451 = vweird.f32 %v360
    %vm452 = vweird.f32 %v446
    %vm453 = vmor %vm451, %vm452
    %v454 = vsel %vm453, %v446, %v450
    %v455 = vand.u32 2147483647, %v360
    %vm456 = vcmp.eq.f32.partialorder %v455, 8.507059e+37
    %v457 = vand.u32 %v360, 2147483648
    %v458 = vor.u32 1.1754944e-38, %v457
    %v459 = vsel %vm456, %v458, %v454
    %v460 = vmul.f32 %v298, %v459
    %v461 = vrcp.pop %v361
    %v462 = vmul.f32 %v361, %v461
    %v463 = vsub.f32 1.0, %v462
    %v464 = vmul.f32 %v461, %v463
    %v465 = vadd.f32 %v461, %v464
    %vm466 = vweird.f32 %v361
    %vm467 = vweird.f32 %v461
    %vm468 = vmor %vm466, %vm467
    %v469 = vsel %vm468, %v461, %v465
    %v470 = vand.u32 2147483647, %v361
    %vm471 = vcmp.eq.f32.partialorder %v470, 8.507059e+37
    %v472 = vand.u32 %v361, 2147483648
    %v473 = vor.u32 1.1754944e-38, %v472
    %v474 = vsel %vm471, %v473, %v469
    %v475 = vmul.f32 %v300, %v474
    %v476 = vrcp.pop %v362
    %v477 = vmul.f32 %v362, %v476
    %v478 = vsub.f32 1.0, %v477
    %v479 = vmul.f32 %v476, %v478
    %v480 = vadd.f32 %v476, %v479
    %vm481 = vweird.f32 %v362
    %vm482 = vweird.f32 %v476
    %vm483 = vmor %vm481, %vm482
    %v484 = vsel %vm483, %v476, %v480
    %v485 = vand.u32 2147483647, %v362
    %vm486 = vcmp.eq.f32.partialorder %v485, 8.507059e+37
    %v487 = vand.u32 %v362, 2147483648
    %v488 = vor.u32 1.1754944e-38, %v487
    %v489 = vsel %vm486, %v488, %v484
    %v490 = vmul.f32 %v302, %v489
    %492 = vset.pattern.permute.xlu0 0
    %493 = vperm.xlu0 %492, %v385
    %v494 = vpop.permute.xlu0 %493
    %497 = vset.pattern.permute.xlu0 0
    %498 = vperm.xlu0 %497, %v400
    %v499 = vpop.permute.xlu0 %498
    %502 = vset.pattern.permute.xlu0 0
    %503 = vperm.xlu0 %502, %v415
    %v504 = vpop.permute.xlu0 %503
    %507 = vset.pattern.permute.xlu0 0
    %508 = vperm.xlu0 %507, %v430
    %v509 = vpop.permute.xlu0 %508
    %512 = vset.pattern.permute.xlu0 0
    %513 = vperm.xlu0 %512, %v445
    %v514 = vpop.permute.xlu0 %513
    %517 = vset.pattern.permute.xlu0 0
    %518 = vperm.xlu0 %517, %v460
    %v519 = vpop.permute.xlu0 %518
    %522 = vset.pattern.permute.xlu0 0
    %523 = vperm.xlu0 %522, %v475
    %v524 = vpop.permute.xlu0 %523
    %527 = vset.pattern.permute.xlu0 0
    %528 = vperm.xlu0 %527, %v490
    %v529 = vpop.permute.xlu0 %528
    %v531 = vmul.f32 %v25, %v494
    %v532 = vmul.f32 %v26, %v499
    %v533 = vmul.f32 %v27, %v504
    %v534 = vmul.f32 %v28, %v509
    %v535 = vmul.f32 %v29, %v514
    %v536 = vmul.f32 %v30, %v519
    %v537 = vmul.f32 %v31, %v524
    %v538 = vmul.f32 %v32, %v529
    %v539 = vsel %vm46, %v531, 0.0
    %v540 = vrot.slane %v539, 4
    %v541 = vadd.f32 %v539, %v540
    %v542 = vrot.slane %v541, 2
    %v543 = vadd.f32 %v541, %v542
    %v544 = vrot.slane %v543, 1
    %v545 = vadd.f32 %v543, %v544
    %v546 = vsel %vm46, %v532, 0.0
    %v547 = vrot.slane %v546, 4
    %v548 = vadd.f32 %v546, %v547
    %v549 = vrot.slane %v548, 2
    %v550 = vadd.f32 %v548, %v549
    %v551 = vrot.slane %v550, 1
    %v552 = vadd.f32 %v550, %v551
    %v553 = vsel %vm46, %v533, 0.0
    %v554 = vrot.slane %v553, 4
    %v555 = vadd.f32 %v553, %v554
    %v556 = vrot.slane %v555, 2
    %v557 = vadd.f32 %v555, %v556
    %v558 = vrot.slane %v557, 1
    %v559 = vadd.f32 %v557, %v558
    %v560 = vsel %vm46, %v534, 0.0
    %v561 = vrot.slane %v560, 4
    %v562 = vadd.f32 %v560, %v561
    %v563 = vrot.slane %v562, 2
    %v564 = vadd.f32 %v562, %v563
    %v565 = vrot.slane %v564, 1
    %v566 = vadd.f32 %v564, %v565
    %v567 = vsel %vm46, %v535, 0.0
    %v568 = vrot.slane %v567, 4
    %v569 = vadd.f32 %v567, %v568
    %v570 = vrot.slane %v569, 2
    %v571 = vadd.f32 %v569, %v570
    %v572 = vrot.slane %v571, 1
    %v573 = vadd.f32 %v571, %v572
    %v574 = vsel %vm46, %v536, 0.0
    %v575 = vrot.slane %v574, 4
    %v576 = vadd.f32 %v574, %v575
    %v577 = vrot.slane %v576, 2
    %v578 = vadd.f32 %v576, %v577
    %v579 = vrot.slane %v578, 1
    %v580 = vadd.f32 %v578, %v579
    %v581 = vsel %vm46, %v537, 0.0
    %v582 = vrot.slane %v581, 4
    %v583 = vadd.f32 %v581, %v582
    %v584 = vrot.slane %v583, 2
    %v585 = vadd.f32 %v583, %v584
    %v586 = vrot.slane %v585, 1
    %v587 = vadd.f32 %v585, %v586
    %v588 = vsel %vm46, %v538, 0.0
    %v589 = vrot.slane %v588, 4
    %v590 = vadd.f32 %v588, %v589
    %v591 = vrot.slane %v590, 2
    %v592 = vadd.f32 %v590, %v591
    %v593 = vrot.slane %v592, 1
    %v594 = vadd.f32 %v592, %v593
    %595 = vmatpush.msra.mxu0 0.0
    %596 = vmatpush.msra.mxu0 0.0
    %597 = vmatpush.msra.mxu0 0.0
    %598 = vmatpush.msra.mxu0 0.0
    %599 = vmatpush.msra.mxu0 0.0
    %600 = vmatpush.msra.mxu0 0.0
    %601 = vmatpush.msra.mxu0 0.0
    %602 = vmatpush.msra.mxu0 0.0
    %603 = vmatpush.msra.mxu0 0.0
    %604 = vmatpush.msra.mxu0 0.0
    %605 = vmatpush.msra.mxu0 0.0
    %606 = vmatpush.msra.mxu0 0.0
    %607 = vmatpush.msra.mxu0 %v45
    %608 = vmatpush.msra.mxu0 %v44
    %609 = vmatpush.msra.mxu0 %v43
    %610 = vmatpush.msra.mxu0 %v42
    %611 = vmatmul.f32.gmra.mxu0 %v48
    %v612 = vpop.f32.mrf.mxu0
    %v613 = vadd.f32 0.0, %v612
    %614 = vdwg.mxu0
    %v623 = vsel %vm243, %v552, %v545
    %v624 = vsel %vm245, %v559, %v623
    %v625 = vsel %vm247, %v566, %v624
    %v626 = vsel %vm249, %v573, %v625
    %v627 = vsel %vm251, %v580, %v626
    %v628 = vsel %vm253, %v587, %v627
    %v629 = vsel %vm255, %v594, %v628
    %v630 = vsel %vm46, %v629, 0
    %632 = vmatpush.msra.mxu0 0.0
    %633 = vmatpush.msra.mxu0 0.0
    %634 = vmatpush.msra.mxu0 0.0
    %635 = vmatpush.msra.mxu0 0.0
    %636 = vmatpush.msra.mxu0 0.0
    %637 = vmatpush.msra.mxu0 0.0
    %638 = vmatpush.msra.mxu0 0.0
    %639 = vmatpush.msra.mxu0 0.0
    %640 = vmatpush.msra.mxu0 0.0
    %641 = vmatpush.msra.mxu0 0.0
    %642 = vmatpush.msra.mxu0 0.0
    %643 = vmatpush.msra.mxu0 0.0
    %644 = vmatpush.msra.mxu0 %v41
    %645 = vmatpush.msra.mxu0 %v40
    %646 = vmatpush.msra.mxu0 %v39
    %647 = vmatpush.msra.mxu0 %v38
    %648 = vmatmul.f32.gmra.mxu0 %v630
    %v649 = vpop.f32.mrf.mxu0
    %v650 = vadd.f32 %v613, %v649
    %651 = vdwg.mxu0
    %v652 = vtanh.pop %v650
    %653 = vst.msk [vmem:[#allocation2] sm:$0xff] %vm46, %v652
    %v654 = vperm.slane %v494, %v234
    %v655 = vperm.slane %v499, %v234
    %v656 = vperm.slane %v504, %v234
    %v657 = vperm.slane %v509, %v234
    %v658 = vperm.slane %v514, %v234
    %v659 = vperm.slane %v519, %v234
    %v660 = vperm.slane %v524, %v234
    %v661 = vperm.slane %v529, %v234
    %v662 = vsel %vm243, %v655, %v654
    %v663 = vsel %vm245, %v656, %v662
    %v664 = vsel %vm247, %v657, %v663
    %v665 = vsel %vm249, %v658, %v664
    %v666 = vsel %vm251, %v659, %v665
    %v667 = vsel %vm253, %v660, %v666
    %v668 = vsel %vm255, %v661, %v667
    %670 = vst.msk [vmem:[#allocation4] sm:$0xff] %vm258, %v668
    // Predicated region
    $region22: #{tpu_custom_call.1} parent=1 // pred_check
      _
    $region23: #{tpu_custom_call.1} parent=1 // pred_check_branch
      %672 = sbr.rel (0) target = $region25
    $region24: #{tpu_custom_call.1} parent=1 // pred_region
      %674 = vsyncadd [#allocation3], 96
      %s675 = sshll.u32 [#allocation2], 4
      %s676 = int_to_ptr.vmem [resolvable:$true] %s675
      %s677 = sshll.u32 %s5, 4
      %s678 = int_to_ptr.hbm [resolvable:$true] %s677
      %683 = dma.vmem_to_hbm [thread:$0]  %s676, 32, %s678, [#allocation3], 32, 32, 2
    $region25: #{tpu_custom_call.1} parent=1 // pred_fallthru
      _
    // Predicated region
    $region26: #{tpu_custom_call.1} parent=1 // pred_check
      _
    $region27: #{tpu_custom_call.1} parent=1 // pred_check_branch
      %685 = sbr.rel (0) target = $region29
    $region28: #{tpu_custom_call.1} parent=1 // pred_region
      %687 = vsyncadd [#allocation5], 96
      %s688 = sshll.u32 [#allocation4], 4
      %s689 = int_to_ptr.vmem [resolvable:$true] %s688
      %s690 = sshll.u32 %s6, 4
      %s691 = int_to_ptr.hbm [resolvable:$true] %s690
      %696 = dma.vmem_to_hbm [thread:$0]  %s689, 32, %s691, [#allocation5], 32, 32, 2
    $region29: #{tpu_custom_call.1} parent=1 // pred_fallthru
      _
    // Predicated region
    $region30: #{tpu_custom_call.1} parent=1 // pred_check
      _
    $region31: #{tpu_custom_call.1} parent=1 // pred_check_branch
      %698 = sbr.rel (0) target = $region33
    $region32: #{tpu_custom_call.1} parent=1 // pred_region
      %700 = dma.done [#allocation3], 128
    $region33: #{tpu_custom_call.1} parent=1 // pred_fallthru
      _
    // Predicated region
    $region34: #{tpu_custom_call.1} parent=1 // pred_check
      _
    $region35: #{tpu_custom_call.1} parent=1 // pred_check_branch
      %702 = sbr.rel (0) target = $region37
    $region36: #{tpu_custom_call.1} parent=1 // pred_region
      %704 = dma.done [#allocation5], 128
    $region37: #{tpu_custom_call.1} parent=1 // pred_fallthru
      _
    %705 = vsyncpa [#allocation3], 1
    %706 = vsyncpa [#allocation5], 1

</llo_original>
